<compile_context>
chip_gen: v5e
topology: v5e:2x2
jax: 0.10.0
libtpu: 0.0.40
codegen_flags: <defaults>
</compile_context>

<pallas_src>
import functools

import jax
import jax.numpy as jnp
import numpy as np
from jax.experimental import pallas as pl
from jax.experimental.pallas import tpu as pltpu

_BN_EPS = 1e-5


# ----------------------------------------------------------------------------
# The single fused kernel: both branches, the pose regressor and the classifier.
# All weights live in two packed VMEM slabs; intermediates stay in vregs.
# ----------------------------------------------------------------------------
def _make_kernel(hid):
    bf16 = jnp.bfloat16
    f32 = jnp.float32

    def kernel(mano_ref, img_ref, mw1_ref, iw1_ref, w_ref, b_ref, out_ref):
        def w(i, n=1):                      # static (hid, n*hid) weight view
            return w_ref[:, pl.ds(i * hid, n * hid)]

        def b(i):                           # static (1, hid) bias / BN-shift row
            return b_ref[pl.ds(i, 1), :]

        def lin(x, wt, sh, relu=True, res=None):
            y = jnp.dot(x.astype(bf16), wt, preferred_element_type=f32) + sh
            if res is not None:
                y = y + res
            return jnp.maximum(y, 0.0) if relu else y

        # ---- mano branch: Linear+BN+ReLU (Dropout=id), ResidualBlock ----
        m = lin(mano_ref[...], mw1_ref[...], b(0))
        t = lin(m, w(0), b(1))
        m = lin(t, w(1), b(2), res=m)

        # ---- img branch ----
        g = lin(img_ref[...], iw1_ref[...], b(3))
        t = lin(g, w(2), b(4))
        g = lin(t, w(3), b(5), res=g)

        # ---- fused: g @ [rw1 | cw1i]  (regressor lin1 and classifier img half
        #      share the same LHS -> one wide matmul) ----
        y = jnp.dot(g.astype(bf16), w(4, 2), preferred_element_type=f32)
        t_reg = jnp.maximum(y[:, :hid] + b(6), 0.0)

        # ---- classifier trunk: concat([m, g]) @ W == m @ W_m + g @ W_i ----
        h = jnp.maximum(
            jnp.dot(m.astype(bf16), w(6), preferred_element_type=f32)
            + y[:, hid:] + b(7), 0.0)

        # ---- img pose regressor head (N padded to hid; extra lanes are zero) ----
        pose = jnp.dot(t_reg.astype(bf16), w(7), preferred_element_type=f32) + b(8)

        # ---- classifier ResidualBlock + head (N padded to hid) ----
        t = lin(h, w(8), b(9))
        h = lin(t, w(9), b(10), res=h)
        cls = jnp.dot(h.astype(bf16), w(10), preferred_element_type=f32) + b(11)

        # Single lane-dense output tile: [ cls | pose ]
        out_ref[:, pl.ds(0, hid)] = cls
        out_ref[:, pl.ds(hid, hid)] = pose

    return kernel


@functools.partial(jax.jit,
                   static_argnames=("num_classes", "mano_dim", "hidden", "block_b"))
def taxonomy_forward(kp, mano_pose, img_feat, *, num_classes, mano_dim, hidden,
                     block_b=256):
    if mano_pose.ndim == 3 and mano_pose.shape[1] == 1:
        mano_pose = mano_pose[:, 0, :]          # .squeeze(1)
    mano_pose = mano_pose.astype(jnp.float32)
    img_feat = img_feat.astype(jnp.float32)

    B, mano_k = mano_pose.shape
    img_k = img_feat.shape[1]
    hid = hidden

    # Full-batch block at small B; 8-row-aligned 256-row tiles otherwise
    # (parallel grid -> v7x 2nd TensorCore, DMA/compute pipelining at large B).
    tb = B if B <= block_b else block_b
    grid = (pl.cdiv(B, tb),)

    flops = 2 * B * (mano_k + img_k + 11 * hid) * hid
    bytes_acc = int(kp["mw1"].size * 2 + kp["iw1"].size * 2 + kp["w_slab"].size * 2
                    + kp["b_slab"].size * 4
                    + (B * (mano_k + img_k) + B * 2 * hid) * 4)

    out = pl.pallas_call(
        _make_kernel(hid),
        out_shape=jax.ShapeDtypeStruct((B, 2 * hid), jnp.float32),
        grid=grid,
        in_specs=[
            pl.BlockSpec((tb, mano_k), lambda i: (i, 0)),
            pl.BlockSpec((tb, img_k), lambda i: (i, 0)),
            pl.BlockSpec(kp["mw1"].shape, lambda i: (0, 0)),
            pl.BlockSpec(kp["iw1"].shape, lambda i: (0, 0)),
            pl.BlockSpec(kp["w_slab"].shape, lambda i: (0, 0)),
            pl.BlockSpec(kp["b_slab"].shape, lambda i: (0, 0)),
        ],
        out_specs=pl.BlockSpec((tb, 2 * hid), lambda i: (i, 0)),
        compiler_params=pltpu.CompilerParams(dimension_semantics=("parallel",)),
        cost_estimate=pl.CostEstimate(flops=flops, transcendentals=0,
                                      bytes_accessed=bytes_acc),
    )(mano_pose, img_feat, kp["mw1"], kp["iw1"], kp["w_slab"], kp["b_slab"])

    return {
        "classification": out[:, :num_classes],
        "img_pose_regression": out[:, hid:hid + mano_dim],
    }


# ----------------------------------------------------------------------------
# Deterministic raw parameters (PyTorch-like init), then BN-folded + packed
# kernel parameters (bf16 weight slabs, f32 bias slab).
# ----------------------------------------------------------------------------
def _linear_raw(key, fan_in, fan_out):
    kw, kb = jax.random.split(key)
    bound = 1.0 / np.sqrt(fan_in)
    return {
        "w": jax.random.uniform(kw, (fan_in, fan_out), jnp.float32, -bound, bound),
        "b": jax.random.uniform(kb, (fan_out,), jnp.float32, -bound, bound),
    }


def _bn_raw(key, dim):
    kg, kb, km, kv = jax.random.split(key, 4)
    return {
        "gamma": 1.0 + 0.1 * jax.random.normal(kg, (dim,), jnp.float32),
        "beta": 0.1 * jax.random.normal(kb, (dim,), jnp.float32),
        "mean": 0.1 * jax.random.normal(km, (dim,), jnp.float32),
        "var": 1.0 + 0.1 * jax.nn.softplus(jax.random.normal(kv, (dim,), jnp.float32)),
    }


def _branch_raw(key, in_dim, hidden):
    kk = jax.random.split(key, 6)
    return {
        "lin1": _linear_raw(kk[0], in_dim, hidden), "bn1": _bn_raw(kk[1], hidden),
        "rlin1": _linear_raw(kk[2], hidden, hidden), "rbn1": _bn_raw(kk[3], hidden),
        "rlin2": _linear_raw(kk[4], hidden, hidden), "rbn2": _bn_raw(kk[5], hidden),
    }


def make_raw_params(key, mano_dim, img_dim, hidden, num_classes):
    k1, k2, k3, k4, k5, k6 = jax.random.split(key, 6)
    return {
        "mano_branch": _branch_raw(k1, mano_dim, hidden),
        "img_branch": _branch_raw(k2, img_dim, hidden),
        "regressor": {"lin1": _linear_raw(k3, hidden, hidden),
                      "lin2": _linear_raw(k4, hidden, mano_dim)},
        "cls_branch": _branch_raw(k5, 2 * hidden, hidden),
        "cls_out": _linear_raw(k6, hidden, num_classes),
    }


def _fold_bn(lin, bn, eps=_BN_EPS):
    s = bn["gamma"] / jnp.sqrt(bn["var"] + eps)
    w = lin["w"] * s[None, :]
    sh = lin["b"] * s + bn["beta"] - bn["mean"] * s
    return w, sh.reshape(1, -1)


def _pad_n(a, n_pad):
    return jnp.pad(a, ((0, 0), (0, n_pad - a.shape[1])))


def make_kernel_params(raw, mano_dim, hidden, num_classes):
    hid = hidden
    assert num_classes <= hid and mano_dim <= hid
    assert hid % 128 == 0, "slab lane-slicing assumes hidden is a multiple of 128"

    mb = raw["mano_branch"]
    mw1, msh1 = _fold_bn(mb["lin1"], mb["bn1"])
    mrw1, mrsh1 = _fold_bn(mb["rlin1"], mb["rbn1"])
    mrw2, mrsh2 = _fold_bn(mb["rlin2"], mb["rbn2"])

    ib = raw["img_branch"]
    iw1, ish1 = _fold_bn(ib["lin1"], ib["bn1"])
    irw1, irsh1 = _fold_bn(ib["rlin1"], ib["rbn1"])
    irw2, irsh2 = _fold_bn(ib["rlin2"], ib["rbn2"])

    rg = raw["regressor"]
    rw1, rb1 = rg["lin1"]["w"], rg["lin1"]["b"].reshape(1, -1)
    rw2 = _pad_n(rg["lin2"]["w"], hid)
    rb2 = _pad_n(rg["lin2"]["b"].reshape(1, -1), hid)

    cb = raw["cls_branch"]
    cw1, csh1 = _fold_bn(cb["lin1"], cb["bn1"])
    cw1m, cw1i = cw1[:hid], cw1[hid:]           # concat split, never materialized
    crw1, crsh1 = _fold_bn(cb["rlin1"], cb["rbn1"])
    crw2, crsh2 = _fold_bn(cb["rlin2"], cb["rbn2"])
    co = raw["cls_out"]
    cwo = _pad_n(co["w"], hid)
    cbo = _pad_n(co["b"].reshape(1, -1), hid)

    # N-stacked (hid, 11*hid) bf16 weight slab; order matches kernel w(i) indices.
    w_slab = jnp.concatenate(
        [mrw1, mrw2, irw1, irw2, rw1, cw1i, cw1m, rw2, crw1, crw2, cwo],
        axis=1).astype(jnp.bfloat16)
    # (12, hid) f32 bias / folded-shift slab; order matches kernel b(i) indices.
    b_slab = jnp.concatenate(
        [msh1, mrsh1, mrsh2, ish1, irsh1, irsh2, rb1, csh1, rb2, crsh1, crsh2, cbo],
        axis=0).astype(jnp.float32)

    return dict(mw1=mw1.astype(jnp.bfloat16), iw1=iw1.astype(jnp.bfloat16),
                w_slab=w_slab, b_slab=b_slab)


# ----------------------------------------------------------------------------
# Pure-JAX reference from the RAW (un-folded, un-packed) params — validates BN
# folding, concat split, slab packing and padding in eval-mode semantics.
# ----------------------------------------------------------------------------
def _ref_linear(x, p):
    return jnp.dot(x, p["w"], precision=jax.lax.Precision.HIGHEST) + p["b"]


def _ref_bn(x, p, eps=_BN_EPS):
    return (x - p["mean"]) * (p["gamma"] / jnp.sqrt(p["var"] + eps)) + p["beta"]


def _ref_branch(x, p):
    h = jnp.maximum(_ref_bn(_ref_linear(x, p["lin1"]), p["bn1"]), 0.0)
    t = jnp.maximum(_ref_bn(_ref_linear(h, p["rlin1"]), p["rbn1"]), 0.0)
    r = _ref_bn(_ref_linear(t, p["rlin2"]), p["rbn2"])
    return jnp.maximum(h + r, 0.0)


def _ref_forward(raw, input_dict):
    mano = input_dict["mano_pose"]
    if mano.ndim == 3:
        mano = mano[:, 0, :]
    mano_out = _ref_branch(mano, raw["mano_branch"])
    img_out = _ref_branch(input_dict["img_feat"], raw["img_branch"])
    rg = raw["regressor"]
    t = jnp.maximum(_ref_linear(img_out, rg["lin1"]), 0.0)
    pose = _ref_linear(t, rg["lin2"])
    combined = jnp.concatenate([mano_out, img_out], axis=1)
    h = _ref_branch(combined, raw["cls_branch"])
    cls = _ref_linear(h, raw["cls_out"])
    return {"classification": cls, "img_pose_regression": pose}


# ----------------------------------------------------------------------------
if __name__ == "__main__":
    # Small shapes consistent with the module (mano_input_dim=45 kept, rest shrunk).
    B = 8
    MANO_DIM = 45
    IMG_DIM = 128
    HIDDEN = 128
    NUM_CLASSES = 33

    key = jax.random.PRNGKey(0)
    k_params, k_mano, k_img = jax.random.split(key, 3)

    raw = make_raw_params(k_params, MANO_DIM, IMG_DIM, HIDDEN, NUM_CLASSES)
    kp = make_kernel_params(raw, MANO_DIM, HIDDEN, NUM_CLASSES)

    input_dict = {
        # (B, 1, 45): exercises the squeeze(1) path in forward()
        "mano_pose": jax.random.normal(k_mano, (B, 1, MANO_DIM), jnp.float32),
        "img_feat": jax.random.normal(k_img, (B, IMG_DIM), jnp.float32),
    }

    out = taxonomy_forward(kp, input_dict["mano_pose"], input_dict["img_feat"],
                           num_classes=NUM_CLASSES, mano_dim=MANO_DIM, hidden=HIDDEN)
    out = jax.block_until_ready(out)

    ref = _ref_forward(raw, input_dict)
    assert out["classification"].shape == (B, NUM_CLASSES)
    assert out["img_pose_regression"].shape == (B, MANO_DIM)
    # Kernel runs bf16 weights/activations on the MXU (single-pass, same as the
    # default-precision f32 dot); reference is f32 HIGHEST -> modest tolerance.
    np.testing.assert_allclose(np.asarray(out["classification"]),
                               np.asarray(ref["classification"]), rtol=3e-2, atol=3e-2)
    np.testing.assert_allclose(np.asarray(out["img_pose_regression"]),
                               np.asarray(ref["img_pose_regression"]), rtol=3e-2, atol=3e-2)

    print("KERNEL_OK")
</pallas_src>

<mosaic_0001>
module attributes {stable_mosaic.version = 11 : i64} {
  func.func @kernel(%arg0: i32, %arg1: memref<8x45xf32, #tpu.memory_space<vmem>>, %arg2: memref<8x128xf32, #tpu.memory_space<vmem>>, %arg3: memref<45x128xbf16, #tpu.memory_space<vmem>>, %arg4: memref<128x128xbf16, #tpu.memory_space<vmem>>, %arg5: memref<128x1408xbf16, #tpu.memory_space<vmem>>, %arg6: memref<12x128xf32, #tpu.memory_space<vmem>>, %arg7: memref<8x256xf32, #tpu.memory_space<vmem>>) attributes {dimension_semantics = [#tpu.dimension_semantics<parallel>], iteration_bounds = array<i64: 1>, scalar_prefetch = 0 : i64, scratch_operands = 0 : i64, tpu.core_type = #tpu.core_type<tc>, window_params = [{transform_indices = @transform_0, window_bounds = array<i64: 8, 45>}, {transform_indices = @transform_1, window_bounds = array<i64: 8, 128>}, {pipeline_mode = #tpu.pipeline_mode<synchronous>, transform_indices = @transform_2, window_bounds = array<i64: 45, 128>}, {pipeline_mode = #tpu.pipeline_mode<synchronous>, transform_indices = @transform_3, window_bounds = array<i64: 128, 128>}, {pipeline_mode = #tpu.pipeline_mode<synchronous>, transform_indices = @transform_4, window_bounds = array<i64: 128, 1408>}, {pipeline_mode = #tpu.pipeline_mode<synchronous>, transform_indices = @transform_5, window_bounds = array<i64: 12, 128>}, {transform_indices = @transform_6, window_bounds = array<i64: 8, 256>}]} {
    %c0 = arith.constant 0 : index
    %c0_0 = arith.constant 0 : index
    %0 = vector.load %arg1[%c0, %c0_0] : memref<8x45xf32, #tpu.memory_space<vmem>>, vector<8x45xf32>
    %c0_1 = arith.constant 0 : index
    %c0_2 = arith.constant 0 : index
    %1 = vector.load %arg3[%c0_1, %c0_2] : memref<45x128xbf16, #tpu.memory_space<vmem>>, vector<45x128xbf16>
    %c0_3 = arith.constant 0 : index
    %c0_4 = arith.constant 0 : index
    %2 = vector.load %arg6[%c0_3, %c0_4] : memref<12x128xf32, #tpu.memory_space<vmem>>, vector<1x128xf32>
    %3 = arith.truncf %0 : vector<8x45xf32> to vector<8x45xbf16>
    %cst = arith.constant dense<0.000000e+00> : vector<8x128xf32>
    %4 = tpu.matmul %3, %1, %cst {dimension_numbers = #tpu.dot_dimension_numbers<[1], [0], [0], [1], [0, 0, 1, 1], [], []>} : vector<8x45xbf16>, vector<45x128xbf16>, vector<8x128xf32> -> vector<8x128xf32>
    %5 = vector.broadcast %2 : vector<1x128xf32> to vector<8x128xf32>
    %6 = arith.addf %4, %5 : vector<8x128xf32>
    %cst_5 = arith.constant 0.000000e+00 : f32
    %7 = vector.broadcast %cst_5 : f32 to vector<8x128xf32>
    %8 = arith.maximumf %6, %7 : vector<8x128xf32>
    %c0_6 = arith.constant 0 : index
    %c0_7 = arith.constant 0 : index
    %9 = vector.load %arg5[%c0_6, %c0_7] : memref<128x1408xbf16, #tpu.memory_space<vmem>>, vector<128x128xbf16>
    %c1 = arith.constant 1 : index
    %c0_8 = arith.constant 0 : index
    %10 = vector.load %arg6[%c1, %c0_8] : memref<12x128xf32, #tpu.memory_space<vmem>>, vector<1x128xf32>
    %11 = arith.truncf %8 : vector<8x128xf32> to vector<8x128xbf16>
    %cst_9 = arith.constant dense<0.000000e+00> : vector<8x128xf32>
    %12 = tpu.matmul %11, %9, %cst_9 {dimension_numbers = #tpu.dot_dimension_numbers<[1], [0], [0], [1], [0, 0, 1, 1], [], []>} : vector<8x128xbf16>, vector<128x128xbf16>, vector<8x128xf32> -> vector<8x128xf32>
    %13 = vector.broadcast %10 : vector<1x128xf32> to vector<8x128xf32>
    %14 = arith.addf %12, %13 : vector<8x128xf32>
    %cst_10 = arith.constant 0.000000e+00 : f32
    %15 = vector.broadcast %cst_10 : f32 to vector<8x128xf32>
    %16 = arith.maximumf %14, %15 : vector<8x128xf32>
    %c0_11 = arith.constant 0 : index
    %c128 = arith.constant 128 : index
    %17 = vector.load %arg5[%c0_11, %c128] : memref<128x1408xbf16, #tpu.memory_space<vmem>>, vector<128x128xbf16>
    %c2 = arith.constant 2 : index
    %c0_12 = arith.constant 0 : index
    %18 = vector.load %arg6[%c2, %c0_12] : memref<12x128xf32, #tpu.memory_space<vmem>>, vector<1x128xf32>
    %19 = arith.truncf %16 : vector<8x128xf32> to vector<8x128xbf16>
    %cst_13 = arith.constant dense<0.000000e+00> : vector<8x128xf32>
    %20 = tpu.matmul %19, %17, %cst_13 {dimension_numbers = #tpu.dot_dimension_numbers<[1], [0], [0], [1], [0, 0, 1, 1], [], []>} : vector<8x128xbf16>, vector<128x128xbf16>, vector<8x128xf32> -> vector<8x128xf32>
    %21 = vector.broadcast %18 : vector<1x128xf32> to vector<8x128xf32>
    %22 = arith.addf %20, %21 : vector<8x128xf32>
    %23 = arith.addf %22, %8 : vector<8x128xf32>
    %cst_14 = arith.constant 0.000000e+00 : f32
    %24 = vector.broadcast %cst_14 : f32 to vector<8x128xf32>
    %25 = arith.maximumf %23, %24 : vector<8x128xf32>
    %c0_15 = arith.constant 0 : index
    %c0_16 = arith.constant 0 : index
    %26 = vector.load %arg2[%c0_15, %c0_16] : memref<8x128xf32, #tpu.memory_space<vmem>>, vector<8x128xf32>
    %c0_17 = arith.constant 0 : index
    %c0_18 = arith.constant 0 : index
    %27 = vector.load %arg4[%c0_17, %c0_18] : memref<128x128xbf16, #tpu.memory_space<vmem>>, vector<128x128xbf16>
    %c3 = arith.constant 3 : index
    %c0_19 = arith.constant 0 : index
    %28 = vector.load %arg6[%c3, %c0_19] : memref<12x128xf32, #tpu.memory_space<vmem>>, vector<1x128xf32>
    %29 = arith.truncf %26 : vector<8x128xf32> to vector<8x128xbf16>
    %cst_20 = arith.constant dense<0.000000e+00> : vector<8x128xf32>
    %30 = tpu.matmul %29, %27, %cst_20 {dimension_numbers = #tpu.dot_dimension_numbers<[1], [0], [0], [1], [0, 0, 1, 1], [], []>} : vector<8x128xbf16>, vector<128x128xbf16>, vector<8x128xf32> -> vector<8x128xf32>
    %31 = vector.broadcast %28 : vector<1x128xf32> to vector<8x128xf32>
    %32 = arith.addf %30, %31 : vector<8x128xf32>
    %cst_21 = arith.constant 0.000000e+00 : f32
    %33 = vector.broadcast %cst_21 : f32 to vector<8x128xf32>
    %34 = arith.maximumf %32, %33 : vector<8x128xf32>
    %c0_22 = arith.constant 0 : index
    %c256 = arith.constant 256 : index
    %35 = vector.load %arg5[%c0_22, %c256] : memref<128x1408xbf16, #tpu.memory_space<vmem>>, vector<128x128xbf16>
    %c4 = arith.constant 4 : index
    %c0_23 = arith.constant 0 : index
    %36 = vector.load %arg6[%c4, %c0_23] : memref<12x128xf32, #tpu.memory_space<vmem>>, vector<1x128xf32>
    %37 = arith.truncf %34 : vector<8x128xf32> to vector<8x128xbf16>
    %cst_24 = arith.constant dense<0.000000e+00> : vector<8x128xf32>
    %38 = tpu.matmul %37, %35, %cst_24 {dimension_numbers = #tpu.dot_dimension_numbers<[1], [0], [0], [1], [0, 0, 1, 1], [], []>} : vector<8x128xbf16>, vector<128x128xbf16>, vector<8x128xf32> -> vector<8x128xf32>
    %39 = vector.broadcast %36 : vector<1x128xf32> to vector<8x128xf32>
    %40 = arith.addf %38, %39 : vector<8x128xf32>
    %cst_25 = arith.constant 0.000000e+00 : f32
    %41 = vector.broadcast %cst_25 : f32 to vector<8x128xf32>
    %42 = arith.maximumf %40, %41 : vector<8x128xf32>
    %c0_26 = arith.constant 0 : index
    %c384 = arith.constant 384 : index
    %43 = vector.load %arg5[%c0_26, %c384] : memref<128x1408xbf16, #tpu.memory_space<vmem>>, vector<128x128xbf16>
    %c5 = arith.constant 5 : index
    %c0_27 = arith.constant 0 : index
    %44 = vector.load %arg6[%c5, %c0_27] : memref<12x128xf32, #tpu.memory_space<vmem>>, vector<1x128xf32>
    %45 = arith.truncf %42 : vector<8x128xf32> to vector<8x128xbf16>
    %cst_28 = arith.constant dense<0.000000e+00> : vector<8x128xf32>
    %46 = tpu.matmul %45, %43, %cst_28 {dimension_numbers = #tpu.dot_dimension_numbers<[1], [0], [0], [1], [0, 0, 1, 1], [], []>} : vector<8x128xbf16>, vector<128x128xbf16>, vector<8x128xf32> -> vector<8x128xf32>
    %47 = vector.broadcast %44 : vector<1x128xf32> to vector<8x128xf32>
    %48 = arith.addf %46, %47 : vector<8x128xf32>
    %49 = arith.addf %48, %34 : vector<8x128xf32>
    %cst_29 = arith.constant 0.000000e+00 : f32
    %50 = vector.broadcast %cst_29 : f32 to vector<8x128xf32>
    %51 = arith.maximumf %49, %50 : vector<8x128xf32>
    %52 = arith.truncf %51 : vector<8x128xf32> to vector<8x128xbf16>
    %c0_30 = arith.constant 0 : index
    %c512 = arith.constant 512 : index
    %53 = vector.load %arg5[%c0_30, %c512] : memref<128x1408xbf16, #tpu.memory_space<vmem>>, vector<128x256xbf16>
    %cst_31 = arith.constant dense<0.000000e+00> : vector<8x256xf32>
    %54 = tpu.matmul %52, %53, %cst_31 {dimension_numbers = #tpu.dot_dimension_numbers<[1], [0], [0], [1], [0, 0, 1, 1], [], []>} : vector<8x128xbf16>, vector<128x256xbf16>, vector<8x256xf32> -> vector<8x256xf32>
    %55 = vector.extract_strided_slice %54 {offsets = [0, 0], sizes = [8, 128], strides = [1, 1]} : vector<8x256xf32> to vector<8x128xf32>
    %c6 = arith.constant 6 : index
    %c0_32 = arith.constant 0 : index
    %56 = vector.load %arg6[%c6, %c0_32] : memref<12x128xf32, #tpu.memory_space<vmem>>, vector<1x128xf32>
    %57 = vector.broadcast %56 : vector<1x128xf32> to vector<8x128xf32>
    %58 = arith.addf %55, %57 : vector<8x128xf32>
    %cst_33 = arith.constant 0.000000e+00 : f32
    %59 = vector.broadcast %cst_33 : f32 to vector<8x128xf32>
    %60 = arith.maximumf %58, %59 : vector<8x128xf32>
    %61 = arith.truncf %25 : vector<8x128xf32> to vector<8x128xbf16>
    %c0_34 = arith.constant 0 : index
    %c768 = arith.constant 768 : index
    %62 = vector.load %arg5[%c0_34, %c768] : memref<128x1408xbf16, #tpu.memory_space<vmem>>, vector<128x128xbf16>
    %cst_35 = arith.constant dense<0.000000e+00> : vector<8x128xf32>
    %63 = tpu.matmul %61, %62, %cst_35 {dimension_numbers = #tpu.dot_dimension_numbers<[1], [0], [0], [1], [0, 0, 1, 1], [], []>} : vector<8x128xbf16>, vector<128x128xbf16>, vector<8x128xf32> -> vector<8x128xf32>
    %64 = vector.extract_strided_slice %54 {offsets = [0, 128], sizes = [8, 128], strides = [1, 1]} : vector<8x256xf32> to vector<8x128xf32>
    %65 = arith.addf %63, %64 : vector<8x128xf32>
    %c7 = arith.constant 7 : index
    %c0_36 = arith.constant 0 : index
    %66 = vector.load %arg6[%c7, %c0_36] : memref<12x128xf32, #tpu.memory_space<vmem>>, vector<1x128xf32>
    %67 = vector.broadcast %66 : vector<1x128xf32> to vector<8x128xf32>
    %68 = arith.addf %65, %67 : vector<8x128xf32>
    %cst_37 = arith.constant 0.000000e+00 : f32
    %69 = vector.broadcast %cst_37 : f32 to vector<8x128xf32>
    %70 = arith.maximumf %68, %69 : vector<8x128xf32>
    %71 = arith.truncf %60 : vector<8x128xf32> to vector<8x128xbf16>
    %c0_38 = arith.constant 0 : index
    %c896 = arith.constant 896 : index
    %72 = vector.load %arg5[%c0_38, %c896] : memref<128x1408xbf16, #tpu.memory_space<vmem>>, vector<128x128xbf16>
    %cst_39 = arith.constant dense<0.000000e+00> : vector<8x128xf32>
    %73 = tpu.matmul %71, %72, %cst_39 {dimension_numbers = #tpu.dot_dimension_numbers<[1], [0], [0], [1], [0, 0, 1, 1], [], []>} : vector<8x128xbf16>, vector<128x128xbf16>, vector<8x128xf32> -> vector<8x128xf32>
    %c8 = arith.constant 8 : index
    %c0_40 = arith.constant 0 : index
    %74 = vector.load %arg6[%c8, %c0_40] : memref<12x128xf32, #tpu.memory_space<vmem>>, vector<1x128xf32>
    %75 = vector.broadcast %74 : vector<1x128xf32> to vector<8x128xf32>
    %76 = arith.addf %73, %75 : vector<8x128xf32>
    %c0_41 = arith.constant 0 : index
    %c1024 = arith.constant 1024 : index
    %77 = vector.load %arg5[%c0_41, %c1024] : memref<128x1408xbf16, #tpu.memory_space<vmem>>, vector<128x128xbf16>
    %c9 = arith.constant 9 : index
    %c0_42 = arith.constant 0 : index
    %78 = vector.load %arg6[%c9, %c0_42] : memref<12x128xf32, #tpu.memory_space<vmem>>, vector<1x128xf32>
    %79 = arith.truncf %70 : vector<8x128xf32> to vector<8x128xbf16>
    %cst_43 = arith.constant dense<0.000000e+00> : vector<8x128xf32>
    %80 = tpu.matmul %79, %77, %cst_43 {dimension_numbers = #tpu.dot_dimension_numbers<[1], [0], [0], [1], [0, 0, 1, 1], [], []>} : vector<8x128xbf16>, vector<128x128xbf16>, vector<8x128xf32> -> vector<8x128xf32>
    %81 = vector.broadcast %78 : vector<1x128xf32> to vector<8x128xf32>
    %82 = arith.addf %80, %81 : vector<8x128xf32>
    %cst_44 = arith.constant 0.000000e+00 : f32
    %83 = vector.broadcast %cst_44 : f32 to vector<8x128xf32>
    %84 = arith.maximumf %82, %83 : vector<8x128xf32>
    %c0_45 = arith.constant 0 : index
    %c1152 = arith.constant 1152 : index
    %85 = vector.load %arg5[%c0_45, %c1152] : memref<128x1408xbf16, #tpu.memory_space<vmem>>, vector<128x128xbf16>
    %c10 = arith.constant 10 : index
    %c0_46 = arith.constant 0 : index
    %86 = vector.load %arg6[%c10, %c0_46] : memref<12x128xf32, #tpu.memory_space<vmem>>, vector<1x128xf32>
    %87 = arith.truncf %84 : vector<8x128xf32> to vector<8x128xbf16>
    %cst_47 = arith.constant dense<0.000000e+00> : vector<8x128xf32>
    %88 = tpu.matmul %87, %85, %cst_47 {dimension_numbers = #tpu.dot_dimension_numbers<[1], [0], [0], [1], [0, 0, 1, 1], [], []>} : vector<8x128xbf16>, vector<128x128xbf16>, vector<8x128xf32> -> vector<8x128xf32>
    %89 = vector.broadcast %86 : vector<1x128xf32> to vector<8x128xf32>
    %90 = arith.addf %88, %89 : vector<8x128xf32>
    %91 = arith.addf %90, %70 : vector<8x128xf32>
    %cst_48 = arith.constant 0.000000e+00 : f32
    %92 = vector.broadcast %cst_48 : f32 to vector<8x128xf32>
    %93 = arith.maximumf %91, %92 : vector<8x128xf32>
    %94 = arith.truncf %93 : vector<8x128xf32> to vector<8x128xbf16>
    %c0_49 = arith.constant 0 : index
    %c1280 = arith.constant 1280 : index
    %95 = vector.load %arg5[%c0_49, %c1280] : memref<128x1408xbf16, #tpu.memory_space<vmem>>, vector<128x128xbf16>
    %cst_50 = arith.constant dense<0.000000e+00> : vector<8x128xf32>
    %96 = tpu.matmul %94, %95, %cst_50 {dimension_numbers = #tpu.dot_dimension_numbers<[1], [0], [0], [1], [0, 0, 1, 1], [], []>} : vector<8x128xbf16>, vector<128x128xbf16>, vector<8x128xf32> -> vector<8x128xf32>
    %c11 = arith.constant 11 : index
    %c0_51 = arith.constant 0 : index
    %97 = vector.load %arg6[%c11, %c0_51] : memref<12x128xf32, #tpu.memory_space<vmem>>, vector<1x128xf32>
    %98 = vector.broadcast %97 : vector<1x128xf32> to vector<8x128xf32>
    %99 = arith.addf %96, %98 : vector<8x128xf32>
    %c0_52 = arith.constant 0 : index
    %c0_53 = arith.constant 0 : index
    %100 = vector.load %arg7[%c0_52, %c0_53] : memref<8x256xf32, #tpu.memory_space<vmem>>, vector<8x128xf32>
    tpu.vector_store %arg7[%c0_52, %c0_53], %99 {strides = array<i32>} : memref<8x256xf32, #tpu.memory_space<vmem>>, vector<8x128xf32>,
    %c0_54 = arith.constant 0 : index
    %c128_55 = arith.constant 128 : index
    %101 = vector.load %arg7[%c0_54, %c128_55] : memref<8x256xf32, #tpu.memory_space<vmem>>, vector<8x128xf32>
    tpu.vector_store %arg7[%c0_54, %c128_55], %76 {strides = array<i32>} : memref<8x256xf32, #tpu.memory_space<vmem>>, vector<8x128xf32>,
    return
  }
  func.func @transform_0(%arg0: i32) -> (i32, i32) {
    %c0_i32 = arith.constant 0 : i32
    %c0_i32_0 = arith.constant 0 : i32
    return %arg0, %c0_i32 : i32, i32
  }
  func.func @transform_1(%arg0: i32) -> (i32, i32) {
    %c0_i32 = arith.constant 0 : i32
    %c0_i32_0 = arith.constant 0 : i32
    return %arg0, %c0_i32 : i32, i32
  }
  func.func @transform_2(%arg0: i32) -> (i32, i32) {
    %c0_i32 = arith.constant 0 : i32
    %c0_i32_0 = arith.constant 0 : i32
    %c0_i32_1 = arith.constant 0 : i32
    return %c0_i32, %c0_i32_0 : i32, i32
  }
  func.func @transform_3(%arg0: i32) -> (i32, i32) {
    %c0_i32 = arith.constant 0 : i32
    %c0_i32_0 = arith.constant 0 : i32
    %c0_i32_1 = arith.constant 0 : i32
    return %c0_i32, %c0_i32_0 : i32, i32
  }
  func.func @transform_4(%arg0: i32) -> (i32, i32) {
    %c0_i32 = arith.constant 0 : i32
    %c0_i32_0 = arith.constant 0 : i32
    %c0_i32_1 = arith.constant 0 : i32
    return %c0_i32, %c0_i32_0 : i32, i32
  }
  func.func @transform_5(%arg0: i32) -> (i32, i32) {
    %c0_i32 = arith.constant 0 : i32
    %c0_i32_0 = arith.constant 0 : i32
    %c0_i32_1 = arith.constant 0 : i32
    return %c0_i32, %c0_i32_0 : i32, i32
  }
  func.func @transform_6(%arg0: i32) -> (i32, i32) {
    %c0_i32 = arith.constant 0 : i32
    %c0_i32_0 = arith.constant 0 : i32
    return %arg0, %c0_i32 : i32, i32
  }
}

</mosaic_0001>

<llo_original>
// kernel: taxonomy_forward.1
$region0: #{taxonomy_forward.1}
  #allocation0 [shape = 'u32[]', space=smem, size = 0x4, offset = 0x4, fixed_abs, tag = 'smem constant byte address 0x4 - core index']
  #allocation1 [shape = 'u32[72,128]{1,0:T(1,128)}', space=vmem, size = 0x9000, scoped, tag = 'internal scratch']
  %s0 = inlined_call_operand.hbm [shape: f32[8,45], index: 0, kind: input, shape index: {}]
  %s1 = inlined_call_operand.hbm [shape: f32[8,128], index: 1, kind: input, shape index: {}]
  %s2 = inlined_call_operand.hbm [shape: bf16[45,128], index: 2, kind: input, shape index: {}]
  %s3 = inlined_call_operand.hbm [shape: bf16[128,128], index: 3, kind: input, shape index: {}]
  %s4 = inlined_call_operand.hbm [shape: bf16[128,1408], index: 4, kind: input, shape index: {}]
  %s5 = inlined_call_operand.hbm [shape: f32[12,128], index: 5, kind: input, shape index: {}]
  %s6 = inlined_call_operand.vmem [shape: f32[8,256], index: 6, kind: output, shape index: {}]
  %s7 = sld [smem:[#allocation0]]
  $region58: #{taxonomy_forward.1} parent=0
    _
  %s9 = ssub.s32 1, %s7
  %s10 = scalar_select 0, %s9, %s7
  $region1: #{taxonomy_forward.1} parent=0
    #allocation2 [shape = 'u8[4096]{0}', space=vmem, size = 0x1000, scoped, tag = 'input window, operand 0, single buffered']
    #allocation3 [shape = 's32[1]{0}', space=sflag, size = 0x4, scoped, tag = 'scoped memory for taxonomy_forward.1']
    #allocation4 [shape = 'u8[4096]{0}', space=vmem, size = 0x1000, scoped, tag = 'input window, operand 1, single buffered']
    #allocation5 [shape = 's32[1]{0}', space=sflag, size = 0x4, scoped, tag = 'scoped memory for taxonomy_forward.1']
    #allocation6 [shape = 'u8[12288]{0}', space=vmem, size = 0x3000, scoped, tag = 'input window, operand 2, single buffered']
    #allocation7 [shape = 'u8[32768]{0}', space=vmem, size = 0x8000, scoped, tag = 'input window, operand 3, single buffered']
    #allocation8 [shape = 's32[1]{0}', space=sflag, size = 0x4, scoped, tag = 'scoped memory for taxonomy_forward.1']
    #allocation9 [shape = 'u8[360448]{0}', space=vmem, size = 0x58000, scoped, tag = 'input window, operand 4, single buffered']
    #allocation10 [shape = 'u8[8192]{0}', space=vmem, size = 0x2000, scoped, tag = 'input window, operand 5, single buffered']
    #allocation11 [shape = 's32[1]{0}', space=sflag, size = 0x4, scoped, tag = 'scoped memory for taxonomy_forward.1']
    %11 = vsyncpa [#allocation3], 0
    %12 = vsyncpa [#allocation5], 0
    %13 = vsyncpa [#allocation8], 0
    %14 = vsyncpa [#allocation11], 0
    // Predicated region
    $region2: #{taxonomy_forward.1} parent=1 // pred_check
      _
    $region3: #{taxonomy_forward.1} parent=1 // pred_check_branch
      %16 = sbr.rel (0) target = $region5
    $region4: #{taxonomy_forward.1} parent=1 // pred_region
      %18 = vsyncadd [#allocation3], 0
      %s20 = sshll.u32 %s0, 4
      %s21 = int_to_ptr.hbm [resolvable:$true] %s20
      %s22 = sshll.u32 [#allocation2], 4
      %s23 = int_to_ptr.vmem [resolvable:$true] %s22
      %25 = dma.hbm_to_vmem [thread:$0]  %s21, 128, %s23, [#allocation3]
    $region5: #{taxonomy_forward.1} parent=1 // pred_fallthru
      _
    // Predicated region
    $region6: #{taxonomy_forward.1} parent=1 // pred_check
      _
    $region7: #{taxonomy_forward.1} parent=1 // pred_check_branch
      %27 = sbr.rel (0) target = $region9
    $region8: #{taxonomy_forward.1} parent=1 // pred_region
      %29 = vsyncadd [#allocation5], 0
      %s31 = sshll.u32 %s1, 4
      %s32 = int_to_ptr.hbm [resolvable:$true] %s31
      %s33 = sshll.u32 [#allocation4], 4
      %s34 = int_to_ptr.vmem [resolvable:$true] %s33
      %36 = dma.hbm_to_vmem [thread:$0]  %s32, 128, %s34, [#allocation5]
    $region9: #{taxonomy_forward.1} parent=1 // pred_fallthru
      _
    // Predicated region
    $region10: #{taxonomy_forward.1} parent=1 // pred_check
      _
    $region11: #{taxonomy_forward.1} parent=1 // pred_check_branch
      %38 = sbr.rel (0) target = $region13
    $region12: #{taxonomy_forward.1} parent=1 // pred_region
      %40 = vsyncadd [#allocation5], 0
      %s41 = sshll.u32 %s2, 4
      %s42 = int_to_ptr.hbm [resolvable:$true] %s41
      %s43 = sshll.u32 [#allocation6], 4
      %s44 = int_to_ptr.vmem [resolvable:$true] %s43
      %49 = dma.hbm_to_vmem [thread:$0]  %s42, 384, %s44, [#allocation5], 64, 64, 4
    $region13: #{taxonomy_forward.1} parent=1 // pred_fallthru
      _
    // Predicated region
    $region14: #{taxonomy_forward.1} parent=1 // pred_check
      _
    $region15: #{taxonomy_forward.1} parent=1 // pred_check_branch
      %51 = sbr.rel (0) target = $region17
    $region16: #{taxonomy_forward.1} parent=1 // pred_region
      %53 = vsyncadd [#allocation8], 0
      %s54 = sshll.u32 %s3, 4
      %s55 = int_to_ptr.hbm [resolvable:$true] %s54
      %s56 = sshll.u32 [#allocation7], 4
      %s57 = int_to_ptr.vmem [resolvable:$true] %s56
      %62 = dma.hbm_to_vmem [thread:$0]  %s55, 1024, %s57, [#allocation8], 64, 64, 4
    $region17: #{taxonomy_forward.1} parent=1 // pred_fallthru
      _
    // Predicated region
    $region18: #{taxonomy_forward.1} parent=1 // pred_check
      _
    $region19: #{taxonomy_forward.1} parent=1 // pred_check_branch
      %64 = sbr.rel (0) target = $region21
    $region20: #{taxonomy_forward.1} parent=1 // pred_region
      %66 = vsyncadd [#allocation8], 0
      %s67 = sshll.u32 %s4, 4
      %s68 = int_to_ptr.hbm [resolvable:$true] %s67
      %s69 = sshll.u32 [#allocation9], 4
      %s70 = int_to_ptr.vmem [resolvable:$true] %s69
      %75 = dma.hbm_to_vmem [thread:$0]  %s68, 11264, %s70, [#allocation8], 704, 704, 44
    $region21: #{taxonomy_forward.1} parent=1 // pred_fallthru
      _
    // Predicated region
    $region22: #{taxonomy_forward.1} parent=1 // pred_check
      _
    $region23: #{taxonomy_forward.1} parent=1 // pred_check_branch
      %77 = sbr.rel (0) target = $region25
    $region24: #{taxonomy_forward.1} parent=1 // pred_region
      %79 = vsyncadd [#allocation11], 0
      %s80 = sshll.u32 %s5, 4
      %s81 = int_to_ptr.hbm [resolvable:$true] %s80
      %s82 = sshll.u32 [#allocation10], 4
      %s83 = int_to_ptr.vmem [resolvable:$true] %s82
      %88 = dma.hbm_to_vmem [thread:$0]  %s81, 256, %s83, [#allocation11], 128, 128, 8
    $region25: #{taxonomy_forward.1} parent=1 // pred_fallthru
      _
    // Predicated region
    $region26: #{taxonomy_forward.1} parent=1 // pred_check
      _
    $region27: #{taxonomy_forward.1} parent=1 // pred_check_branch
      %90 = sbr.rel (0) target = $region29
    $region28: #{taxonomy_forward.1} parent=1 // pred_region
      %92 = dma.done [#allocation3], 128
    $region29: #{taxonomy_forward.1} parent=1 // pred_fallthru
      _
    // Predicated region
    $region30: #{taxonomy_forward.1} parent=1 // pred_check
      _
    $region31: #{taxonomy_forward.1} parent=1 // pred_check_branch
      %94 = sbr.rel (0) target = $region33
    $region32: #{taxonomy_forward.1} parent=1 // pred_region
      %96 = dma.done [#allocation5], 128
    $region33: #{taxonomy_forward.1} parent=1 // pred_fallthru
      _
    // Predicated region
    $region34: #{taxonomy_forward.1} parent=1 // pred_check
      _
    $region35: #{taxonomy_forward.1} parent=1 // pred_check_branch
      %98 = sbr.rel (0) target = $region37
    $region36: #{taxonomy_forward.1} parent=1 // pred_region
      %100 = dma.done [#allocation5], 384
    $region37: #{taxonomy_forward.1} parent=1 // pred_fallthru
      _
    // Predicated region
    $region38: #{taxonomy_forward.1} parent=1 // pred_check
      _
    $region39: #{taxonomy_forward.1} parent=1 // pred_check_branch
      %102 = sbr.rel (0) target = $region41
    $region40: #{taxonomy_forward.1} parent=1 // pred_region
      %104 = dma.done [#allocation8], 1024
    $region41: #{taxonomy_forward.1} parent=1 // pred_fallthru
      _
    // Predicated region
    $region42: #{taxonomy_forward.1} parent=1 // pred_check
      _
    $region43: #{taxonomy_forward.1} parent=1 // pred_check_branch
      %106 = sbr.rel (0) target = $region45
    $region44: #{taxonomy_forward.1} parent=1 // pred_region
      %108 = dma.done [#allocation8], 11264
    $region45: #{taxonomy_forward.1} parent=1 // pred_fallthru
      _
    // Predicated region
    $region46: #{taxonomy_forward.1} parent=1 // pred_check
      _
    $region47: #{taxonomy_forward.1} parent=1 // pred_check_branch
      %110 = sbr.rel (0) target = $region49
    $region48: #{taxonomy_forward.1} parent=1 // pred_region
      %112 = dma.done [#allocation11], 256
    $region49: #{taxonomy_forward.1} parent=1 // pred_fallthru
      _
    %v114 = vld [vmem:[#allocation2] sm:$0xff]
    %v115 = vld [vmem:[#allocation6] sm:$0xf]
    %v116 = vld [vmem:[#allocation6 + $0x4] sm:$0xf]
    %v117 = vld [vmem:[#allocation6 + $0x8] sm:$0xf]
    %v118 = vld [vmem:[#allocation6 + $0xc] sm:$0xf]
    %v119 = vld [vmem:[#allocation6 + $0x10] sm:$0xf]
    %v120 = vld [vmem:[#allocation6 + $0x14] sm:$0x7]
    %v121 = vld [vmem:[#allocation10] sm:$0x1]
    %v122 = vpack.c.bf16 %v114, %v114
    %v123 = vperm.slane %v121, 0
    %v130 = vunpack.c.l.b16 %v115
    %v131 = vunpack.c.l.b16 %v116
    %v132 = vunpack.c.l.b16 %v117
    %v133 = vunpack.c.l.b16 %v118
    %v134 = vunpack.c.l.b16 %v119
    %v135 = vunpack.c.l.b16 %v120
    %v136 = vpack.c.b16 %v131, %v130
    %v137 = vpack.c.b16 %v133, %v132
    %v138 = vpack.c.b16 %v135, %v134
    %vm141 = vcmask 367616
    %v143 = vsel %vm141, %v122, 0
    %vm145 = vcmask 1045504
    %vm146 = vcmask 1046528
    %v147 = vsel %vm145, 4294967295, 65535
    %v148 = vsel %vm146, %v147, 0
    %v150 = vand.u32 %v138, %v148
    %152 = vmatpush.bf16.msra.mxu0 0
    %153 = vmatpush.bf16.msra.mxu0 0
    %154 = vmatpush.bf16.msra.mxu0 0
    %155 = vmatpush.bf16.msra.mxu0 0
    %156 = vmatpush.bf16.msra.mxu0 0
    %157 = vmatpush.bf16.msra.mxu0 %v150
    %158 = vmatpush.bf16.msra.mxu0 %v137
    %159 = vmatpush.bf16.msra.mxu0 %v136
    %160 = vmatmul.bf16.gmra.mxu0 %v143
    %v161 = vpop.f32.mrf.mxu0
    %v162 = vadd.f32 %v123, %v161
    %v163 = vpop.f32.mrf.mxu0
    %164 = vdwg.mxu0
    %v165 = vmax.f32 %v162, 0.0
    %v166 = vld [vmem:[#allocation9] sm:$0xf]
    %v167 = vld [vmem:[#allocation9 + $0x2c] sm:$0xf]
    %v168 = vld [vmem:[#allocation9 + $0x58] sm:$0xf]
    %v169 = vld [vmem:[#allocation9 + $0x84] sm:$0xf]
    %v170 = vld [vmem:[#allocation9 + $0xb0] sm:$0xf]
    %v171 = vld [vmem:[#allocation9 + $0xdc] sm:$0xf]
    %v172 = vld [vmem:[#allocation9 + $0x108] sm:$0xf]
    %v173 = vld [vmem:[#allocation9 + $0x134] sm:$0xf]
    %v174 = vld [vmem:[#allocation9 + $0x160] sm:$0xf]
    %v175 = vld [vmem:[#allocation9 + $0x18c] sm:$0xf]
    %v176 = vld [vmem:[#allocation9 + $0x1b8] sm:$0xf]
    %v177 = vld [vmem:[#allocation9 + $0x1e4] sm:$0xf]
    %v178 = vld [vmem:[#allocation9 + $0x210] sm:$0xf]
    %v179 = vld [vmem:[#allocation9 + $0x23c] sm:$0xf]
    %v180 = vld [vmem:[#allocation9 + $0x268] sm:$0xf]
    %v181 = vld [vmem:[#allocation9 + $0x294] sm:$0xf]
    %v182 = vld [vmem:[#allocation10 + $0x1] sm:$0x1]
    %v183 = vpack.c.bf16 %v165, %v165
    %v184 = vperm.slane %v182, 0
    %v201 = vunpack.c.l.b16 %v166
    %v202 = vunpack.c.l.b16 %v167
    %v203 = vunpack.c.l.b16 %v168
    %v204 = vunpack.c.l.b16 %v169
    %v205 = vunpack.c.l.b16 %v170
    %v206 = vunpack.c.l.b16 %v171
    %v207 = vunpack.c.l.b16 %v172
    %v208 = vunpack.c.l.b16 %v173
    %v209 = vunpack.c.l.b16 %v174
    %v210 = vunpack.c.l.b16 %v175
    %v211 = vunpack.c.l.b16 %v176
    %v212 = vunpack.c.l.b16 %v177
    %v213 = vunpack.c.l.b16 %v178
    %v214 = vunpack.c.l.b16 %v179
    %v215 = vunpack.c.l.b16 %v180
    %v216 = vunpack.c.l.b16 %v181
    %v217 = vpack.c.b16 %v202, %v201
    %v218 = vpack.c.b16 %v204, %v203
    %v219 = vpack.c.b16 %v206, %v205
    %v220 = vpack.c.b16 %v208, %v207
    %v221 = vpack.c.b16 %v210, %v209
    %v222 = vpack.c.b16 %v212, %v211
    %v223 = vpack.c.b16 %v214, %v213
    %v224 = vpack.c.b16 %v216, %v215
    %233 = vmatpush.bf16.msra.mxu0 %v224
    %234 = vmatpush.bf16.msra.mxu0 %v223
    %235 = vmatpush.bf16.msra.mxu0 %v222
    %236 = vmatpush.bf16.msra.mxu0 %v221
    %237 = vmatpush.bf16.msra.mxu0 %v220
    %238 = vmatpush.bf16.msra.mxu0 %v219
    %239 = vmatpush.bf16.msra.mxu0 %v218
    %240 = vmatpush.bf16.msra.mxu0 %v217
    %241 = vmatmul.bf16.gmra.mxu0 %v183
    %v242 = vpop.f32.mrf.mxu0
    %v243 = vadd.f32 %v184, %v242
    %v244 = vpop.f32.mrf.mxu0
    %245 = vdwg.mxu0
    %v246 = vmax.f32 %v243, 0.0
    %v247 = vld [vmem:[#allocation9 + $0x4] sm:$0xf]
    %v248 = vld [vmem:[#allocation9 + $0x30] sm:$0xf]
    %v249 = vld [vmem:[#allocation9 + $0x5c] sm:$0xf]
    %v250 = vld [vmem:[#allocation9 + $0x88] sm:$0xf]
    %v251 = vld [vmem:[#allocation9 + $0xb4] sm:$0xf]
    %v252 = vld [vmem:[#allocation9 + $0xe0] sm:$0xf]
    %v253 = vld [vmem:[#allocation9 + $0x10c] sm:$0xf]
    %v254 = vld [vmem:[#allocation9 + $0x138] sm:$0xf]
    %v255 = vld [vmem:[#allocation9 + $0x164] sm:$0xf]
    %v256 = vld [vmem:[#allocation9 + $0x190] sm:$0xf]
    %v257 = vld [vmem:[#allocation9 + $0x1bc] sm:$0xf]
    %v258 = vld [vmem:[#allocation9 + $0x1e8] sm:$0xf]
    %v259 = vld [vmem:[#allocation9 + $0x214] sm:$0xf]
    %v260 = vld [vmem:[#allocation9 + $0x240] sm:$0xf]
    %v261 = vld [vmem:[#allocation9 + $0x26c] sm:$0xf]
    %v262 = vld [vmem:[#allocation9 + $0x298] sm:$0xf]
    %v263 = vld [vmem:[#allocation10 + $0x2] sm:$0x1]
    %v264 = vpack.c.bf16 %v246, %v246
    %v265 = vperm.slane %v263, 0
    %v282 = vunpack.c.l.b16 %v247
    %v283 = vunpack.c.l.b16 %v248
    %v284 = vunpack.c.l.b16 %v249
    %v285 = vunpack.c.l.b16 %v250
    %v286 = vunpack.c.l.b16 %v251
    %v287 = vunpack.c.l.b16 %v252
    %v288 = vunpack.c.l.b16 %v253
    %v289 = vunpack.c.l.b16 %v254
    %v290 = vunpack.c.l.b16 %v255
    %v291 = vunpack.c.l.b16 %v256
    %v292 = vunpack.c.l.b16 %v257
    %v293 = vunpack.c.l.b16 %v258
    %v294 = vunpack.c.l.b16 %v259
    %v295 = vunpack.c.l.b16 %v260
    %v296 = vunpack.c.l.b16 %v261
    %v297 = vunpack.c.l.b16 %v262
    %v298 = vpack.c.b16 %v283, %v282
    %v299 = vpack.c.b16 %v285, %v284
    %v300 = vpack.c.b16 %v287, %v286
    %v301 = vpack.c.b16 %v289, %v288
    %v302 = vpack.c.b16 %v291, %v290
    %v303 = vpack.c.b16 %v293, %v292
    %v304 = vpack.c.b16 %v295, %v294
    %v305 = vpack.c.b16 %v297, %v296
    %314 = vmatpush.bf16.msra.mxu0 %v305
    %315 = vmatpush.bf16.msra.mxu0 %v304
    %316 = vmatpush.bf16.msra.mxu0 %v303
    %317 = vmatpush.bf16.msra.mxu0 %v302
    %318 = vmatpush.bf16.msra.mxu0 %v301
    %319 = vmatpush.bf16.msra.mxu0 %v300
    %320 = vmatpush.bf16.msra.mxu0 %v299
    %321 = vmatpush.bf16.msra.mxu0 %v298
    %322 = vmatmul.bf16.gmra.mxu0 %v264
    %v323 = vpop.f32.mrf.mxu0
    %v324 = vadd.f32 %v265, %v323
    %v325 = vpop.f32.mrf.mxu0
    %326 = vdwg.mxu0
    %v327 = vadd.f32 %v324, %v165
    %v328 = vmax.f32 %v327, 0.0
    %v329 = vld [vmem:[#allocation4] sm:$0xff]
    %v330 = vld [vmem:[#allocation7] sm:$0xf]
    %v331 = vld [vmem:[#allocation7 + $0x4] sm:$0xf]
    %v332 = vld [vmem:[#allocation7 + $0x8] sm:$0xf]
    %v333 = vld [vmem:[#allocation7 + $0xc] sm:$0xf]
    %v334 = vld [vmem:[#allocation7 + $0x10] sm:$0xf]
    %v335 = vld [vmem:[#allocation7 + $0x14] sm:$0xf]
    %v336 = vld [vmem:[#allocation7 + $0x18] sm:$0xf]
    %v337 = vld [vmem:[#allocation7 + $0x1c] sm:$0xf]
    %v338 = vld [vmem:[#allocation7 + $0x20] sm:$0xf]
    %v339 = vld [vmem:[#allocation7 + $0x24] sm:$0xf]
    %v340 = vld [vmem:[#allocation7 + $0x28] sm:$0xf]
    %v341 = vld [vmem:[#allocation7 + $0x2c] sm:$0xf]
    %v342 = vld [vmem:[#allocation7 + $0x30] sm:$0xf]
    %v343 = vld [vmem:[#allocation7 + $0x34] sm:$0xf]
    %v344 = vld [vmem:[#allocation7 + $0x38] sm:$0xf]
    %v345 = vld [vmem:[#allocation7 + $0x3c] sm:$0xf]
    %v346 = vld [vmem:[#allocation10 + $0x3] sm:$0x1]
    %v347 = vpack.c.bf16 %v329, %v329
    %v348 = vperm.slane %v346, 0
    %v365 = vunpack.c.l.b16 %v330
    %v366 = vunpack.c.l.b16 %v331
    %v367 = vunpack.c.l.b16 %v332
    %v368 = vunpack.c.l.b16 %v333
    %v369 = vunpack.c.l.b16 %v334
    %v370 = vunpack.c.l.b16 %v335
    %v371 = vunpack.c.l.b16 %v336
    %v372 = vunpack.c.l.b16 %v337
    %v373 = vunpack.c.l.b16 %v338
    %v374 = vunpack.c.l.b16 %v339
    %v375 = vunpack.c.l.b16 %v340
    %v376 = vunpack.c.l.b16 %v341
    %v377 = vunpack.c.l.b16 %v342
    %v378 = vunpack.c.l.b16 %v343
    %v379 = vunpack.c.l.b16 %v344
    %v380 = vunpack.c.l.b16 %v345
    %v381 = vpack.c.b16 %v366, %v365
    %v382 = vpack.c.b16 %v368, %v367
    %v383 = vpack.c.b16 %v370, %v369
    %v384 = vpack.c.b16 %v372, %v371
    %v385 = vpack.c.b16 %v374, %v373
    %v386 = vpack.c.b16 %v376, %v375
    %v387 = vpack.c.b16 %v378, %v377
    %v388 = vpack.c.b16 %v380, %v379
    %397 = vmatpush.bf16.msra.mxu0 %v388
    %398 = vmatpush.bf16.msra.mxu0 %v387
    %399 = vmatpush.bf16.msra.mxu0 %v386
    %400 = vmatpush.bf16.msra.mxu0 %v385
    %401 = vmatpush.bf16.msra.mxu0 %v384
    %402 = vmatpush.bf16.msra.mxu0 %v383
    %403 = vmatpush.bf16.msra.mxu0 %v382
    %404 = vmatpush.bf16.msra.mxu0 %v381
    %405 = vmatmul.bf16.gmra.mxu0 %v347
    %v406 = vpop.f32.mrf.mxu0
    %v407 = vadd.f32 %v348, %v406
    %v408 = vpop.f32.mrf.mxu0
    %409 = vdwg.mxu0
    %v410 = vmax.f32 %v407, 0.0
    %v411 = vld [vmem:[#allocation9 + $0x8] sm:$0xf]
    %v412 = vld [vmem:[#allocation9 + $0x34] sm:$0xf]
    %v413 = vld [vmem:[#allocation9 + $0x60] sm:$0xf]
    %v414 = vld [vmem:[#allocation9 + $0x8c] sm:$0xf]
    %v415 = vld [vmem:[#allocation9 + $0xb8] sm:$0xf]
    %v416 = vld [vmem:[#allocation9 + $0xe4] sm:$0xf]
    %v417 = vld [vmem:[#allocation9 + $0x110] sm:$0xf]
    %v418 = vld [vmem:[#allocation9 + $0x13c] sm:$0xf]
    %v419 = vld [vmem:[#allocation9 + $0x168] sm:$0xf]
    %v420 = vld [vmem:[#allocation9 + $0x194] sm:$0xf]
    %v421 = vld [vmem:[#allocation9 + $0x1c0] sm:$0xf]
    %v422 = vld [vmem:[#allocation9 + $0x1ec] sm:$0xf]
    %v423 = vld [vmem:[#allocation9 + $0x218] sm:$0xf]
    %v424 = vld [vmem:[#allocation9 + $0x244] sm:$0xf]
    %v425 = vld [vmem:[#allocation9 + $0x270] sm:$0xf]
    %v426 = vld [vmem:[#allocation9 + $0x29c] sm:$0xf]
    %v427 = vld [vmem:[#allocation10 + $0x4] sm:$0x1]
    %v428 = vpack.c.bf16 %v410, %v410
    %v429 = vperm.slane %v427, 0
    %v446 = vunpack.c.l.b16 %v411
    %v447 = vunpack.c.l.b16 %v412
    %v448 = vunpack.c.l.b16 %v413
    %v449 = vunpack.c.l.b16 %v414
    %v450 = vunpack.c.l.b16 %v415
    %v451 = vunpack.c.l.b16 %v416
    %v452 = vunpack.c.l.b16 %v417
    %v453 = vunpack.c.l.b16 %v418
    %v454 = vunpack.c.l.b16 %v419
    %v455 = vunpack.c.l.b16 %v420
    %v456 = vunpack.c.l.b16 %v421
    %v457 = vunpack.c.l.b16 %v422
    %v458 = vunpack.c.l.b16 %v423
    %v459 = vunpack.c.l.b16 %v424
    %v460 = vunpack.c.l.b16 %v425
    %v461 = vunpack.c.l.b16 %v426
    %v462 = vpack.c.b16 %v447, %v446
    %v463 = vpack.c.b16 %v449, %v448
    %v464 = vpack.c.b16 %v451, %v450
    %v465 = vpack.c.b16 %v453, %v452
    %v466 = vpack.c.b16 %v455, %v454
    %v467 = vpack.c.b16 %v457, %v456
    %v468 = vpack.c.b16 %v459, %v458
    %v469 = vpack.c.b16 %v461, %v460
    %478 = vmatpush.bf16.msra.mxu0 %v469
    %479 = vmatpush.bf16.msra.mxu0 %v468
    %480 = vmatpush.bf16.msra.mxu0 %v467
    %481 = vmatpush.bf16.msra.mxu0 %v466
    %482 = vmatpush.bf16.msra.mxu0 %v465
    %483 = vmatpush.bf16.msra.mxu0 %v464
    %484 = vmatpush.bf16.msra.mxu0 %v463
    %485 = vmatpush.bf16.msra.mxu0 %v462
    %486 = vmatmul.bf16.gmra.mxu0 %v428
    %v487 = vpop.f32.mrf.mxu0
    %v488 = vadd.f32 %v429, %v487
    %v489 = vpop.f32.mrf.mxu0
    %490 = vdwg.mxu0
    %v491 = vmax.f32 %v488, 0.0
    %v492 = vld [vmem:[#allocation9 + $0xc] sm:$0xf]
    %v493 = vld [vmem:[#allocation9 + $0x38] sm:$0xf]
    %v494 = vld [vmem:[#allocation9 + $0x64] sm:$0xf]
    %v495 = vld [vmem:[#allocation9 + $0x90] sm:$0xf]
    %v496 = vld [vmem:[#allocation9 + $0xbc] sm:$0xf]
    %v497 = vld [vmem:[#allocation9 + $0xe8] sm:$0xf]
    %v498 = vld [vmem:[#allocation9 + $0x114] sm:$0xf]
    %v499 = vld [vmem:[#allocation9 + $0x140] sm:$0xf]
    %v500 = vld [vmem:[#allocation9 + $0x16c] sm:$0xf]
    %v501 = vld [vmem:[#allocation9 + $0x198] sm:$0xf]
    %v502 = vld [vmem:[#allocation9 + $0x1c4] sm:$0xf]
    %v503 = vld [vmem:[#allocation9 + $0x1f0] sm:$0xf]
    %v504 = vld [vmem:[#allocation9 + $0x21c] sm:$0xf]
    %v505 = vld [vmem:[#allocation9 + $0x248] sm:$0xf]
    %v506 = vld [vmem:[#allocation9 + $0x274] sm:$0xf]
    %v507 = vld [vmem:[#allocation9 + $0x2a0] sm:$0xf]
    %v508 = vld [vmem:[#allocation10 + $0x5] sm:$0x1]
    %v509 = vpack.c.bf16 %v491, %v491
    %v510 = vperm.slane %v508, 0
    %v527 = vunpack.c.l.b16 %v492
    %v528 = vunpack.c.l.b16 %v493
    %v529 = vunpack.c.l.b16 %v494
    %v530 = vunpack.c.l.b16 %v495
    %v531 = vunpack.c.l.b16 %v496
    %v532 = vunpack.c.l.b16 %v497
    %v533 = vunpack.c.l.b16 %v498
    %v534 = vunpack.c.l.b16 %v499
    %v535 = vunpack.c.l.b16 %v500
    %v536 = vunpack.c.l.b16 %v501
    %v537 = vunpack.c.l.b16 %v502
    %v538 = vunpack.c.l.b16 %v503
    %v539 = vunpack.c.l.b16 %v504
    %v540 = vunpack.c.l.b16 %v505
    %v541 = vunpack.c.l.b16 %v506
    %v542 = vunpack.c.l.b16 %v507
    %v543 = vpack.c.b16 %v528, %v527
    %v544 = vpack.c.b16 %v530, %v529
    %v545 = vpack.c.b16 %v532, %v531
    %v546 = vpack.c.b16 %v534, %v533
    %v547 = vpack.c.b16 %v536, %v535
    %v548 = vpack.c.b16 %v538, %v537
    %v549 = vpack.c.b16 %v540, %v539
    %v550 = vpack.c.b16 %v542, %v541
    %559 = vmatpush.bf16.msra.mxu0 %v550
    %560 = vmatpush.bf16.msra.mxu0 %v549
    %561 = vmatpush.bf16.msra.mxu0 %v548
    %562 = vmatpush.bf16.msra.mxu0 %v547
    %563 = vmatpush.bf16.msra.mxu0 %v546
    %564 = vmatpush.bf16.msra.mxu0 %v545
    %565 = vmatpush.bf16.msra.mxu0 %v544
    %566 = vmatpush.bf16.msra.mxu0 %v543
    %567 = vmatmul.bf16.gmra.mxu0 %v509
    %v568 = vpop.f32.mrf.mxu0
    %v569 = vadd.f32 %v510, %v568
    %v570 = vpop.f32.mrf.mxu0
    %571 = vdwg.mxu0
    %v572 = vadd.f32 %v569, %v410
    %v573 = vmax.f32 %v572, 0.0
    %v574 = vpack.c.bf16 %v573, %v573
    %v575 = vld [vmem:[#allocation9 + $0x10] sm:$0xff]
    %v576 = vld [vmem:[#allocation9 + $0x3c] sm:$0xff]
    %v577 = vld [vmem:[#allocation9 + $0x68] sm:$0xff]
    %v578 = vld [vmem:[#allocation9 + $0x94] sm:$0xff]
    %v579 = vld [vmem:[#allocation9 + $0xc0] sm:$0xff]
    %v580 = vld [vmem:[#allocation9 + $0xec] sm:$0xff]
    %v581 = vld [vmem:[#allocation9 + $0x118] sm:$0xff]
    %v582 = vld [vmem:[#allocation9 + $0x144] sm:$0xff]
    %v583 = vld [vmem:[#allocation9 + $0x170] sm:$0xff]
    %v584 = vld [vmem:[#allocation9 + $0x19c] sm:$0xff]
    %v585 = vld [vmem:[#allocation9 + $0x1c8] sm:$0xff]
    %v586 = vld [vmem:[#allocation9 + $0x1f4] sm:$0xff]
    %v587 = vld [vmem:[#allocation9 + $0x220] sm:$0xff]
    %v588 = vld [vmem:[#allocation9 + $0x24c] sm:$0xff]
    %v589 = vld [vmem:[#allocation9 + $0x278] sm:$0xff]
    %v590 = vld [vmem:[#allocation9 + $0x2a4] sm:$0xff]
    %v607 = vunpack.c.l.b16 %v575
    %v608 = vunpack.c.h.b16 %v575
    %v609 = vunpack.c.l.b16 %v576
    %v610 = vunpack.c.h.b16 %v576
    %v611 = vunpack.c.l.b16 %v577
    %v612 = vunpack.c.h.b16 %v577
    %v613 = vunpack.c.l.b16 %v578
    %v614 = vunpack.c.h.b16 %v578
    %v615 = vunpack.c.l.b16 %v579
    %v616 = vunpack.c.h.b16 %v579
    %v617 = vunpack.c.l.b16 %v580
    %v618 = vunpack.c.h.b16 %v580
    %v619 = vunpack.c.l.b16 %v581
    %v620 = vunpack.c.h.b16 %v581
    %v621 = vunpack.c.l.b16 %v582
    %v622 = vunpack.c.h.b16 %v582
    %v623 = vunpack.c.l.b16 %v583
    %v624 = vunpack.c.h.b16 %v583
    %v625 = vunpack.c.l.b16 %v584
    %v626 = vunpack.c.h.b16 %v584
    %v627 = vunpack.c.l.b16 %v585
    %v628 = vunpack.c.h.b16 %v585
    %v629 = vunpack.c.l.b16 %v586
    %v630 = vunpack.c.h.b16 %v586
    %v631 = vunpack.c.l.b16 %v587
    %v632 = vunpack.c.h.b16 %v587
    %v633 = vunpack.c.l.b16 %v588
    %v634 = vunpack.c.h.b16 %v588
    %v635 = vunpack.c.l.b16 %v589
    %v636 = vunpack.c.h.b16 %v589
    %v637 = vunpack.c.l.b16 %v590
    %v638 = vunpack.c.h.b16 %v590
    %v639 = vpack.c.b16 %v609, %v607
    %v640 = vpack.c.b16 %v610, %v608
    %v641 = vpack.c.b16 %v613, %v611
    %v642 = vpack.c.b16 %v614, %v612
    %v643 = vpack.c.b16 %v617, %v615
    %v644 = vpack.c.b16 %v618, %v616
    %v645 = vpack.c.b16 %v621, %v619
    %v646 = vpack.c.b16 %v622, %v620
    %v647 = vpack.c.b16 %v625, %v623
    %v648 = vpack.c.b16 %v626, %v624
    %v649 = vpack.c.b16 %v629, %v627
    %v650 = vpack.c.b16 %v630, %v628
    %v651 = vpack.c.b16 %v633, %v631
    %v652 = vpack.c.b16 %v634, %v632
    %v653 = vpack.c.b16 %v637, %v635
    %v654 = vpack.c.b16 %v638, %v636
    %671 = vmatpush.bf16.msra.mxu0 %v653
    %672 = vmatpush.bf16.msra.mxu0 %v651
    %673 = vmatpush.bf16.msra.mxu0 %v649
    %674 = vmatpush.bf16.msra.mxu0 %v647
    %675 = vmatpush.bf16.msra.mxu0 %v645
    %676 = vmatpush.bf16.msra.mxu0 %v643
    %677 = vmatpush.bf16.msra.mxu0 %v641
    %678 = vmatpush.bf16.msra.mxu0 %v639
    %679 = vmatmul.bf16.gmra.mxu0 %v574
    %v680 = vpop.f32.mrf.mxu0
    %v681 = vadd.f32 0.0, %v680
    %v682 = vpop.f32.mrf.mxu0
    %683 = vdwg.mxu0
    %684 = vmatpush.bf16.msra.mxu0 %v654
    %685 = vmatpush.bf16.msra.mxu0 %v652
    %686 = vmatpush.bf16.msra.mxu0 %v650
    %687 = vmatpush.bf16.msra.mxu0 %v648
    %688 = vmatpush.bf16.msra.mxu0 %v646
    %689 = vmatpush.bf16.msra.mxu0 %v644
    %690 = vmatpush.bf16.msra.mxu0 %v642
    %691 = vmatpush.bf16.msra.mxu0 %v640
    %692 = vmatmul.bf16.gmra.mxu0 %v574
    %v693 = vpop.f32.mrf.mxu0
    %v694 = vadd.f32 0.0, %v693
    %v695 = vpop.f32.mrf.mxu0
    %696 = vdwg.mxu0
    %v697 = vld [vmem:[#allocation10 + $0x6] sm:$0x1]
    %v698 = vperm.slane %v697, 0
    %v699 = vadd.f32 %v681, %v698
    %v700 = vmax.f32 %v699, 0.0
    %v701 = vpack.c.bf16 %v328, %v328
    %v702 = vld [vmem:[#allocation9 + $0x18] sm:$0xf]
    %v703 = vld [vmem:[#allocation9 + $0x44] sm:$0xf]
    %v704 = vld [vmem:[#allocation9 + $0x70] sm:$0xf]
    %v705 = vld [vmem:[#allocation9 + $0x9c] sm:$0xf]
    %v706 = vld [vmem:[#allocation9 + $0xc8] sm:$0xf]
    %v707 = vld [vmem:[#allocation9 + $0xf4] sm:$0xf]
    %v708 = vld [vmem:[#allocation9 + $0x120] sm:$0xf]
    %v709 = vld [vmem:[#allocation9 + $0x14c] sm:$0xf]
    %v710 = vld [vmem:[#allocation9 + $0x178] sm:$0xf]
    %v711 = vld [vmem:[#allocation9 + $0x1a4] sm:$0xf]
    %v712 = vld [vmem:[#allocation9 + $0x1d0] sm:$0xf]
    %v713 = vld [vmem:[#allocation9 + $0x1fc] sm:$0xf]
    %v714 = vld [vmem:[#allocation9 + $0x228] sm:$0xf]
    %v715 = vld [vmem:[#allocation9 + $0x254] sm:$0xf]
    %v716 = vld [vmem:[#allocation9 + $0x280] sm:$0xf]
    %v717 = vld [vmem:[#allocation9 + $0x2ac] sm:$0xf]
    %v734 = vunpack.c.l.b16 %v702
    %v735 = vunpack.c.l.b16 %v703
    %v736 = vunpack.c.l.b16 %v704
    %v737 = vunpack.c.l.b16 %v705
    %v738 = vunpack.c.l.b16 %v706
    %v739 = vunpack.c.l.b16 %v707
    %v740 = vunpack.c.l.b16 %v708
    %v741 = vunpack.c.l.b16 %v709
    %v742 = vunpack.c.l.b16 %v710
    %v743 = vunpack.c.l.b16 %v711
    %v744 = vunpack.c.l.b16 %v712
    %v745 = vunpack.c.l.b16 %v713
    %v746 = vunpack.c.l.b16 %v714
    %v747 = vunpack.c.l.b16 %v715
    %v748 = vunpack.c.l.b16 %v716
    %v749 = vunpack.c.l.b16 %v717
    %v750 = vpack.c.b16 %v735, %v734
    %v751 = vpack.c.b16 %v737, %v736
    %v752 = vpack.c.b16 %v739, %v738
    %v753 = vpack.c.b16 %v741, %v740
    %v754 = vpack.c.b16 %v743, %v742
    %v755 = vpack.c.b16 %v745, %v744
    %v756 = vpack.c.b16 %v747, %v746
    %v757 = vpack.c.b16 %v749, %v748
    %766 = vmatpush.bf16.msra.mxu0 %v757
    %767 = vmatpush.bf16.msra.mxu0 %v756
    %768 = vmatpush.bf16.msra.mxu0 %v755
    %769 = vmatpush.bf16.msra.mxu0 %v754
    %770 = vmatpush.bf16.msra.mxu0 %v753
    %771 = vmatpush.bf16.msra.mxu0 %v752
    %772 = vmatpush.bf16.msra.mxu0 %v751
    %773 = vmatpush.bf16.msra.mxu0 %v750
    %774 = vmatmul.bf16.gmra.mxu0 %v701
    %v775 = vpop.f32.mrf.mxu0
    %v776 = vadd.f32 %v694, %v775
    %v777 = vpop.f32.mrf.mxu0
    %778 = vdwg.mxu0
    %v779 = vld [vmem:[#allocation10 + $0x7] sm:$0x1]
    %v780 = vperm.slane %v779, 0
    %v781 = vadd.f32 %v776, %v780
    %v782 = vmax.f32 %v781, 0.0
    %v783 = vpack.c.bf16 %v700, %v700
    %v784 = vld [vmem:[#allocation9 + $0x1c] sm:$0xf]
    %v785 = vld [vmem:[#allocation9 + $0x48] sm:$0xf]
    %v786 = vld [vmem:[#allocation9 + $0x74] sm:$0xf]
    %v787 = vld [vmem:[#allocation9 + $0xa0] sm:$0xf]
    %v788 = vld [vmem:[#allocation9 + $0xcc] sm:$0xf]
    %v789 = vld [vmem:[#allocation9 + $0xf8] sm:$0xf]
    %v790 = vld [vmem:[#allocation9 + $0x124] sm:$0xf]
    %v791 = vld [vmem:[#allocation9 + $0x150] sm:$0xf]
    %v792 = vld [vmem:[#allocation9 + $0x17c] sm:$0xf]
    %v793 = vld [vmem:[#allocation9 + $0x1a8] sm:$0xf]
    %v794 = vld [vmem:[#allocation9 + $0x1d4] sm:$0xf]
    %v795 = vld [vmem:[#allocation9 + $0x200] sm:$0xf]
    %v796 = vld [vmem:[#allocation9 + $0x22c] sm:$0xf]
    %v797 = vld [vmem:[#allocation9 + $0x258] sm:$0xf]
    %v798 = vld [vmem:[#allocation9 + $0x284] sm:$0xf]
    %v799 = vld [vmem:[#allocation9 + $0x2b0] sm:$0xf]
    %v800 = vld [vmem:[#allocation10 + $0x8] sm:$0x1]
    %v801 = vperm.slane %v800, 0
    %v818 = vunpack.c.l.b16 %v784
    %v819 = vunpack.c.l.b16 %v785
    %v820 = vunpack.c.l.b16 %v786
    %v821 = vunpack.c.l.b16 %v787
    %v822 = vunpack.c.l.b16 %v788
    %v823 = vunpack.c.l.b16 %v789
    %v824 = vunpack.c.l.b16 %v790
    %v825 = vunpack.c.l.b16 %v791
    %v826 = vunpack.c.l.b16 %v792
    %v827 = vunpack.c.l.b16 %v793
    %v828 = vunpack.c.l.b16 %v794
    %v829 = vunpack.c.l.b16 %v795
    %v830 = vunpack.c.l.b16 %v796
    %v831 = vunpack.c.l.b16 %v797
    %v832 = vunpack.c.l.b16 %v798
    %v833 = vunpack.c.l.b16 %v799
    %v834 = vpack.c.b16 %v819, %v818
    %v835 = vpack.c.b16 %v821, %v820
    %v836 = vpack.c.b16 %v823, %v822
    %v837 = vpack.c.b16 %v825, %v824
    %v838 = vpack.c.b16 %v827, %v826
    %v839 = vpack.c.b16 %v829, %v828
    %v840 = vpack.c.b16 %v831, %v830
    %v841 = vpack.c.b16 %v833, %v832
    %850 = vmatpush.bf16.msra.mxu0 %v841
    %851 = vmatpush.bf16.msra.mxu0 %v840
    %852 = vmatpush.bf16.msra.mxu0 %v839
    %853 = vmatpush.bf16.msra.mxu0 %v838
    %854 = vmatpush.bf16.msra.mxu0 %v837
    %855 = vmatpush.bf16.msra.mxu0 %v836
    %856 = vmatpush.bf16.msra.mxu0 %v835
    %857 = vmatpush.bf16.msra.mxu0 %v834
    %858 = vmatmul.bf16.gmra.mxu0 %v783
    %v859 = vpop.f32.mrf.mxu0
    %v860 = vadd.f32 %v801, %v859
    %v861 = vpop.f32.mrf.mxu0
    %862 = vdwg.mxu0
    %v863 = vld [vmem:[#allocation9 + $0x20] sm:$0xf]
    %v864 = vld [vmem:[#allocation9 + $0x4c] sm:$0xf]
    %v865 = vld [vmem:[#allocation9 + $0x78] sm:$0xf]
    %v866 = vld [vmem:[#allocation9 + $0xa4] sm:$0xf]
    %v867 = vld [vmem:[#allocation9 + $0xd0] sm:$0xf]
    %v868 = vld [vmem:[#allocation9 + $0xfc] sm:$0xf]
    %v869 = vld [vmem:[#allocation9 + $0x128] sm:$0xf]
    %v870 = vld [vmem:[#allocation9 + $0x154] sm:$0xf]
    %v871 = vld [vmem:[#allocation9 + $0x180] sm:$0xf]
    %v872 = vld [vmem:[#allocation9 + $0x1ac] sm:$0xf]
    %v873 = vld [vmem:[#allocation9 + $0x1d8] sm:$0xf]
    %v874 = vld [vmem:[#allocation9 + $0x204] sm:$0xf]
    %v875 = vld [vmem:[#allocation9 + $0x230] sm:$0xf]
    %v876 = vld [vmem:[#allocation9 + $0x25c] sm:$0xf]
    %v877 = vld [vmem:[#allocation9 + $0x288] sm:$0xf]
    %v878 = vld [vmem:[#allocation9 + $0x2b4] sm:$0xf]
    %v879 = vld [vmem:[#allocation10 + $0x9] sm:$0x1]
    %v880 = vpack.c.bf16 %v782, %v782
    %v881 = vperm.slane %v879, 0
    %v898 = vunpack.c.l.b16 %v863
    %v899 = vunpack.c.l.b16 %v864
    %v900 = vunpack.c.l.b16 %v865
    %v901 = vunpack.c.l.b16 %v866
    %v902 = vunpack.c.l.b16 %v867
    %v903 = vunpack.c.l.b16 %v868
    %v904 = vunpack.c.l.b16 %v869
    %v905 = vunpack.c.l.b16 %v870
    %v906 = vunpack.c.l.b16 %v871
    %v907 = vunpack.c.l.b16 %v872
    %v908 = vunpack.c.l.b16 %v873
    %v909 = vunpack.c.l.b16 %v874
    %v910 = vunpack.c.l.b16 %v875
    %v911 = vunpack.c.l.b16 %v876
    %v912 = vunpack.c.l.b16 %v877
    %v913 = vunpack.c.l.b16 %v878
    %v914 = vpack.c.b16 %v899, %v898
    %v915 = vpack.c.b16 %v901, %v900
    %v916 = vpack.c.b16 %v903, %v902
    %v917 = vpack.c.b16 %v905, %v904
    %v918 = vpack.c.b16 %v907, %v906
    %v919 = vpack.c.b16 %v909, %v908
    %v920 = vpack.c.b16 %v911, %v910
    %v921 = vpack.c.b16 %v913, %v912
    %930 = vmatpush.bf16.msra.mxu0 %v921
    %931 = vmatpush.bf16.msra.mxu0 %v920
    %932 = vmatpush.bf16.msra.mxu0 %v919
    %933 = vmatpush.bf16.msra.mxu0 %v918
    %934 = vmatpush.bf16.msra.mxu0 %v917
    %935 = vmatpush.bf16.msra.mxu0 %v916
    %936 = vmatpush.bf16.msra.mxu0 %v915
    %937 = vmatpush.bf16.msra.mxu0 %v914
    %938 = vmatmul.bf16.gmra.mxu0 %v880
    %v939 = vpop.f32.mrf.mxu0
    %v940 = vadd.f32 %v881, %v939
    %v941 = vpop.f32.mrf.mxu0
    %942 = vdwg.mxu0
    %v943 = vmax.f32 %v940, 0.0
    %v944 = vld [vmem:[#allocation9 + $0x24] sm:$0xf]
    %v945 = vld [vmem:[#allocation9 + $0x50] sm:$0xf]
    %v946 = vld [vmem:[#allocation9 + $0x7c] sm:$0xf]
    %v947 = vld [vmem:[#allocation9 + $0xa8] sm:$0xf]
    %v948 = vld [vmem:[#allocation9 + $0xd4] sm:$0xf]
    %v949 = vld [vmem:[#allocation9 + $0x100] sm:$0xf]
    %v950 = vld [vmem:[#allocation9 + $0x12c] sm:$0xf]
    %v951 = vld [vmem:[#allocation9 + $0x158] sm:$0xf]
    %v952 = vld [vmem:[#allocation9 + $0x184] sm:$0xf]
    %v953 = vld [vmem:[#allocation9 + $0x1b0] sm:$0xf]
    %v954 = vld [vmem:[#allocation9 + $0x1dc] sm:$0xf]
    %v955 = vld [vmem:[#allocation9 + $0x208] sm:$0xf]
    %v956 = vld [vmem:[#allocation9 + $0x234] sm:$0xf]
    %v957 = vld [vmem:[#allocation9 + $0x260] sm:$0xf]
    %v958 = vld [vmem:[#allocation9 + $0x28c] sm:$0xf]
    %v959 = vld [vmem:[#allocation9 + $0x2b8] sm:$0xf]
    %v960 = vld [vmem:[#allocation10 + $0xa] sm:$0x1]
    %v961 = vpack.c.bf16 %v943, %v943
    %v962 = vperm.slane %v960, 0
    %v979 = vunpack.c.l.b16 %v944
    %v980 = vunpack.c.l.b16 %v945
    %v981 = vunpack.c.l.b16 %v946
    %v982 = vunpack.c.l.b16 %v947
    %v983 = vunpack.c.l.b16 %v948
    %v984 = vunpack.c.l.b16 %v949
    %v985 = vunpack.c.l.b16 %v950
    %v986 = vunpack.c.l.b16 %v951
    %v987 = vunpack.c.l.b16 %v952
    %v988 = vunpack.c.l.b16 %v953
    %v989 = vunpack.c.l.b16 %v954
    %v990 = vunpack.c.l.b16 %v955
    %v991 = vunpack.c.l.b16 %v956
    %v992 = vunpack.c.l.b16 %v957
    %v993 = vunpack.c.l.b16 %v958
    %v994 = vunpack.c.l.b16 %v959
    %v995 = vpack.c.b16 %v980, %v979
    %v996 = vpack.c.b16 %v982, %v981
    %v997 = vpack.c.b16 %v984, %v983
    %v998 = vpack.c.b16 %v986, %v985
    %v999 = vpack.c.b16 %v988, %v987
    %v1000 = vpack.c.b16 %v990, %v989
    %v1001 = vpack.c.b16 %v992, %v991
    %v1002 = vpack.c.b16 %v994, %v993
    %1011 = vmatpush.bf16.msra.mxu0 %v1002
    %1012 = vmatpush.bf16.msra.mxu0 %v1001
    %1013 = vmatpush.bf16.msra.mxu0 %v1000
    %1014 = vmatpush.bf16.msra.mxu0 %v999
    %1015 = vmatpush.bf16.msra.mxu0 %v998
    %1016 = vmatpush.bf16.msra.mxu0 %v997
    %1017 = vmatpush.bf16.msra.mxu0 %v996
    %1018 = vmatpush.bf16.msra.mxu0 %v995
    %1019 = vmatmul.bf16.gmra.mxu0 %v961
    %v1020 = vpop.f32.mrf.mxu0
    %v1021 = vadd.f32 %v962, %v1020
    %v1022 = vpop.f32.mrf.mxu0
    %1023 = vdwg.mxu0
    %v1024 = vadd.f32 %v1021, %v782
    %v1025 = vmax.f32 %v1024, 0.0
    %v1026 = vpack.c.bf16 %v1025, %v1025
    %v1027 = vld [vmem:[#allocation9 + $0x28] sm:$0xf]
    %v1028 = vld [vmem:[#allocation9 + $0x54] sm:$0xf]
    %v1029 = vld [vmem:[#allocation9 + $0x80] sm:$0xf]
    %v1030 = vld [vmem:[#allocation9 + $0xac] sm:$0xf]
    %v1031 = vld [vmem:[#allocation9 + $0xd8] sm:$0xf]
    %v1032 = vld [vmem:[#allocation9 + $0x104] sm:$0xf]
    %v1033 = vld [vmem:[#allocation9 + $0x130] sm:$0xf]
    %v1034 = vld [vmem:[#allocation9 + $0x15c] sm:$0xf]
    %v1035 = vld [vmem:[#allocation9 + $0x188] sm:$0xf]
    %v1036 = vld [vmem:[#allocation9 + $0x1b4] sm:$0xf]
    %v1037 = vld [vmem:[#allocation9 + $0x1e0] sm:$0xf]
    %v1038 = vld [vmem:[#allocation9 + $0x20c] sm:$0xf]
    %v1039 = vld [vmem:[#allocation9 + $0x238] sm:$0xf]
    %v1040 = vld [vmem:[#allocation9 + $0x264] sm:$0xf]
    %v1041 = vld [vmem:[#allocation9 + $0x290] sm:$0xf]
    %v1042 = vld [vmem:[#allocation9 + $0x2bc] sm:$0xf]
    %v1043 = vld [vmem:[#allocation10 + $0xb] sm:$0x1]
    %v1044 = vperm.slane %v1043, 0
    %v1061 = vunpack.c.l.b16 %v1027
    %v1062 = vunpack.c.l.b16 %v1028
    %v1063 = vunpack.c.l.b16 %v1029
    %v1064 = vunpack.c.l.b16 %v1030
    %v1065 = vunpack.c.l.b16 %v1031
    %v1066 = vunpack.c.l.b16 %v1032
    %v1067 = vunpack.c.l.b16 %v1033
    %v1068 = vunpack.c.l.b16 %v1034
    %v1069 = vunpack.c.l.b16 %v1035
    %v1070 = vunpack.c.l.b16 %v1036
    %v1071 = vunpack.c.l.b16 %v1037
    %v1072 = vunpack.c.l.b16 %v1038
    %v1073 = vunpack.c.l.b16 %v1039
    %v1074 = vunpack.c.l.b16 %v1040
    %v1075 = vunpack.c.l.b16 %v1041
    %v1076 = vunpack.c.l.b16 %v1042
    %v1077 = vpack.c.b16 %v1062, %v1061
    %v1078 = vpack.c.b16 %v1064, %v1063
    %v1079 = vpack.c.b16 %v1066, %v1065
    %v1080 = vpack.c.b16 %v1068, %v1067
    %v1081 = vpack.c.b16 %v1070, %v1069
    %v1082 = vpack.c.b16 %v1072, %v1071
    %v1083 = vpack.c.b16 %v1074, %v1073
    %v1084 = vpack.c.b16 %v1076, %v1075
    %1093 = vmatpush.bf16.msra.mxu0 %v1084
    %1094 = vmatpush.bf16.msra.mxu0 %v1083
    %1095 = vmatpush.bf16.msra.mxu0 %v1082
    %1096 = vmatpush.bf16.msra.mxu0 %v1081
    %1097 = vmatpush.bf16.msra.mxu0 %v1080
    %1098 = vmatpush.bf16.msra.mxu0 %v1079
    %1099 = vmatpush.bf16.msra.mxu0 %v1078
    %1100 = vmatpush.bf16.msra.mxu0 %v1077
    %1101 = vmatmul.bf16.gmra.mxu0 %v1026
    %v1102 = vpop.f32.mrf.mxu0
    %v1103 = vadd.f32 %v1044, %v1102
    %v1104 = vpop.f32.mrf.mxu0
    %1105 = vdwg.mxu0
    %1106 = vst [vmem:[%s6] sm:$0xff] %v1103
    %1107 = vst [vmem:[%s6 + $0x8] sm:$0xff] %v860
    // Predicated region
    $region50: #{taxonomy_forward.1} parent=1 // pred_check
      _
    $region51: #{taxonomy_forward.1} parent=1 // pred_check_branch
      %1109 = sbr.rel (0) target = $region53
    $region52: #{taxonomy_forward.1} parent=1 // pred_region
      _
    $region53: #{taxonomy_forward.1} parent=1 // pred_fallthru
      _
    // Predicated region
    $region54: #{taxonomy_forward.1} parent=1 // pred_check
      _
    $region55: #{taxonomy_forward.1} parent=1 // pred_check_branch
      %1111 = sbr.rel (0) target = $region57
    $region56: #{taxonomy_forward.1} parent=1 // pred_region
      _
    $region57: #{taxonomy_forward.1} parent=1 // pred_fallthru
      _
    %1112 = vsyncpa [#allocation3], 1
    %1113 = vsyncpa [#allocation5], 1
    %1114 = vsyncpa [#allocation8], 1
    %1115 = vsyncpa [#allocation11], 1

</llo_original>
